<compile_context>
chip_gen: v7x
topology: tpu7x:2x2x1
jax: 0.10.0
libtpu: 0.0.40
codegen_flags: <defaults>
</compile_context>

<pallas_src>
import numpy as np
import jax
import jax.numpy as jnp
from jax import lax
from jax.experimental import pallas as pl
from jax.experimental.pallas import tpu as pltpu


def _round_up(x, m):
    return ((x + m - 1) // m) * m


def _time_encode_kernel(ts_ref, rep_ref, freq_ref, phase_ref, out_ref):
    # ts_ref:    [TILE_B, L]    float32   (timestamps, L whole per tile)
    # rep_ref:   [L, L*D]       float32   0/1 repeat matrix (rep[l, l*D+d] = 1)
    # freq_ref:  [1, L*D]       float32   basis_freq tiled L times
    # phase_ref: [1, L*D]       float32   phase tiled L times
    # out_ref:   [TILE_B, L*D]  float32   lane-dense output block
    ts = ts_ref[...]                         # [TB, L]
    dt = ts[:, 0:1] - ts                     # [TB, L]   (ft - ts)

    # Broadcast dt along D -> lane-dense [TB, L*D] using the (idle) MXU.
    # HIGHEST precision makes the 0/1 pass-through exact in f32.
    dt_rep = jnp.dot(
        dt, rep_ref[...],
        precision=lax.Precision.HIGHEST,
        preferred_element_type=jnp.float32,
    )                                        # [TB, L*D]

    # VPU mul/add (exact f32), EUP cos; full-width (lane-dense) store.
    out_ref[...] = jnp.cos(dt_rep * freq_ref[...] + phase_ref[...])


def time_encode(ts, basis_freq, phase):
    """ts: [B, L] float32; basis_freq/phase: [D] float32 -> [B, L, D] float32."""
    B, L = ts.shape
    D = basis_freq.shape[0]
    LD = L * D

    # Host-side constants (folded under jit): repeat matrix + tiled params.
    rep = jnp.repeat(jnp.eye(L, dtype=jnp.float32), D, axis=1)        # [L, LD]
    freq_t = jnp.tile(basis_freq.astype(jnp.float32), L).reshape(1, LD)
    phase_t = jnp.tile(phase.astype(jnp.float32), L).reshape(1, LD)

    # Row tile: multiple of 8, <= 1024 rows, f32 output tile <= ~4 MiB so the
    # double-buffered in/out tiles sit comfortably inside v7x's 64 MiB VMEM
    # (and far inside v5e/v6e's 128 MiB).
    max_rows_by_bytes = max(8, (4 * 1024 * 1024) // (LD * 4))
    tile_b = int(min(1024, max_rows_by_bytes, _round_up(B, 8)))
    tile_b = max(8, (tile_b // 8) * 8)

    b_pad = _round_up(B, tile_b)
    ts_p = ts.astype(jnp.float32)
    if b_pad != B:
        # Padded rows compute cos(phase) and are sliced off afterwards.
        ts_p = jnp.pad(ts_p, ((0, b_pad - B), (0, 0)))

    grid = (b_pad // tile_b,)

    out2d = pl.pallas_call(
        _time_encode_kernel,
        out_shape=jax.ShapeDtypeStruct((b_pad, LD), jnp.float32),
        grid_spec=pl.GridSpec(
            grid=grid,
            in_specs=[
                pl.BlockSpec((tile_b, L), lambda i: (i, 0)),   # ts rows
                pl.BlockSpec((L, LD), lambda i: (0, 0)),       # repeat matrix
                pl.BlockSpec((1, LD), lambda i: (0, 0)),       # tiled freq
                pl.BlockSpec((1, LD), lambda i: (0, 0)),       # tiled phase
            ],
            out_specs=pl.BlockSpec((tile_b, LD), lambda i: (i, 0)),
        ),
        compiler_params=pltpu.CompilerParams(
            dimension_semantics=("parallel",),     # v7x: shard rows over 2 TCs
            vmem_limit_bytes=32 * 1024 * 1024,     # explicit, safe on all gens
        ),
        cost_estimate=pl.CostEstimate(
            flops=2 * b_pad * LD,
            transcendentals=b_pad * LD,
            bytes_accessed=4 * (b_pad * LD + b_pad * L + L * LD + 2 * LD),
        ),
    )(ts_p, rep, freq_t, phase_t)

    # Slice off row padding; reshape lane-dense 2-D result back to [B, L, D]
    # (row-major, so this is layout-free outside the kernel).
    return out2d[:B].reshape(B, L, D)
    # TODO(synk): if downstream accepts bf16, emit bf16 output (halves HBM
    # write bytes on v6e/v7x); kept f32 here to match the PyTorch reference.


time_encode_jit = jax.jit(time_encode)


def time_encode_ref(ts, basis_freq, phase):
    """Pure-JAX reference replicating the PyTorch forward exactly."""
    ft = ts[:, 0:1]
    dt = ft - ts
    map_ts = dt[:, :, None] * basis_freq[None, None, :] + phase[None, None, :]
    return jnp.cos(map_ts)


if __name__ == "__main__":
    # Small shapes: batch=2, seq_len=8, expand_dim (time_dim) = 32
    B, L, D = 2, 8, 32

    key = jax.random.PRNGKey(0)
    # Timestamps: non-negative values (typical for event times).
    ts = jax.random.uniform(key, (B, L), dtype=jnp.float32, minval=0.0, maxval=100.0)

    # Deterministic parameter init (matches PyTorch __init__):
    #   basis_freq = 1 / 10 ** linspace(0, 9, time_dim), phase = zeros
    basis_freq = jnp.asarray(1.0 / 10 ** np.linspace(0, 9, D), dtype=jnp.float32)
    phase = jnp.zeros((D,), dtype=jnp.float32)

    out = time_encode_jit(ts, basis_freq, phase)
    out = jax.block_until_ready(out)

    ref = time_encode_ref(ts, basis_freq, phase)
    np.testing.assert_allclose(np.asarray(out), np.asarray(ref), rtol=1e-5, atol=2e-5)

    assert out.shape == (B, L, D)
    assert out.dtype == jnp.float32

    print("KERNEL_OK")
</pallas_src>

<mosaic_0001>
module attributes {stable_mosaic.version = 11 : i64} {
  func.func @_time_encode_kernel(%arg0: i32, %arg1: memref<8x8xf32, #tpu.memory_space<vmem>>, %arg2: memref<8x256xf32, #tpu.memory_space<vmem>>, %arg3: memref<1x256xf32, #tpu.memory_space<vmem>>, %arg4: memref<1x256xf32, #tpu.memory_space<vmem>>, %arg5: memref<8x256xf32, #tpu.memory_space<vmem>>) attributes {dimension_semantics = [#tpu.dimension_semantics<parallel>], iteration_bounds = array<i64: 1>, scalar_prefetch = 0 : i64, scratch_operands = 0 : i64, tpu.core_type = #tpu.core_type<tc>, window_params = [{transform_indices = @transform_0, window_bounds = array<i64: 8, 8>}, {pipeline_mode = #tpu.pipeline_mode<synchronous>, transform_indices = @transform_1, window_bounds = array<i64: 8, 256>}, {pipeline_mode = #tpu.pipeline_mode<synchronous>, transform_indices = @transform_2, window_bounds = array<i64: 1, 256>}, {pipeline_mode = #tpu.pipeline_mode<synchronous>, transform_indices = @transform_3, window_bounds = array<i64: 1, 256>}, {transform_indices = @transform_4, window_bounds = array<i64: 8, 256>}]} {
    %c0 = arith.constant 0 : index
    %c0_0 = arith.constant 0 : index
    %0 = vector.load %arg1[%c0, %c0_0] : memref<8x8xf32, #tpu.memory_space<vmem>>, vector<8x8xf32>
    %1 = vector.extract_strided_slice %0 {offsets = [0, 0], sizes = [8, 1], strides = [1, 1]} : vector<8x8xf32> to vector<8x1xf32>
    %2 = vector.broadcast %1 : vector<8x1xf32> to vector<8x8xf32>
    %3 = arith.subf %2, %0 : vector<8x8xf32>
    %c0_1 = arith.constant 0 : index
    %c0_2 = arith.constant 0 : index
    %4 = vector.load %arg2[%c0_1, %c0_2] : memref<8x256xf32, #tpu.memory_space<vmem>>, vector<8x256xf32>
    %cst = arith.constant dense<0.000000e+00> : vector<8x256xf32>
    %5 = tpu.matmul %3, %4, %cst {dimension_numbers = #tpu.dot_dimension_numbers<[1], [0], [0], [1], [0, 0, 1, 1], [], []>, precision = #tpu.contract_precision<fp32>} : vector<8x8xf32>, vector<8x256xf32>, vector<8x256xf32> -> vector<8x256xf32>
    %c0_3 = arith.constant 0 : index
    %c0_4 = arith.constant 0 : index
    %6 = vector.load %arg3[%c0_3, %c0_4] : memref<1x256xf32, #tpu.memory_space<vmem>>, vector<1x256xf32>
    %7 = vector.broadcast %6 : vector<1x256xf32> to vector<8x256xf32>
    %8 = arith.mulf %5, %7 : vector<8x256xf32>
    %c0_5 = arith.constant 0 : index
    %c0_6 = arith.constant 0 : index
    %9 = vector.load %arg4[%c0_5, %c0_6] : memref<1x256xf32, #tpu.memory_space<vmem>>, vector<1x256xf32>
    %10 = vector.broadcast %9 : vector<1x256xf32> to vector<8x256xf32>
    %11 = arith.addf %8, %10 : vector<8x256xf32>
    %12 = math.cos %11 : vector<8x256xf32>
    %c0_7 = arith.constant 0 : index
    %c0_8 = arith.constant 0 : index
    %13 = vector.load %arg5[%c0_7, %c0_8] : memref<8x256xf32, #tpu.memory_space<vmem>>, vector<8x256xf32>
    tpu.vector_store %arg5[%c0_7, %c0_8], %12 {strides = array<i32>} : memref<8x256xf32, #tpu.memory_space<vmem>>, vector<8x256xf32>,
    return
  }
  func.func @transform_0(%arg0: i32) -> (i32, i32) {
    %c0_i32 = arith.constant 0 : i32
    %c0_i32_0 = arith.constant 0 : i32
    return %arg0, %c0_i32 : i32, i32
  }
  func.func @transform_1(%arg0: i32) -> (i32, i32) {
    %c0_i32 = arith.constant 0 : i32
    %c0_i32_0 = arith.constant 0 : i32
    %c0_i32_1 = arith.constant 0 : i32
    return %c0_i32, %c0_i32_0 : i32, i32
  }
  func.func @transform_2(%arg0: i32) -> (i32, i32) {
    %c0_i32 = arith.constant 0 : i32
    %c0_i32_0 = arith.constant 0 : i32
    %c0_i32_1 = arith.constant 0 : i32
    return %c0_i32, %c0_i32_0 : i32, i32
  }
  func.func @transform_3(%arg0: i32) -> (i32, i32) {
    %c0_i32 = arith.constant 0 : i32
    %c0_i32_0 = arith.constant 0 : i32
    %c0_i32_1 = arith.constant 0 : i32
    return %c0_i32, %c0_i32_0 : i32, i32
  }
  func.func @transform_4(%arg0: i32) -> (i32, i32) {
    %c0_i32 = arith.constant 0 : i32
    %c0_i32_0 = arith.constant 0 : i32
    return %arg0, %c0_i32 : i32, i32
  }
}

</mosaic_0001>

<llo_original>
// kernel: tile.13
$region0: #{tile.13}
  #allocation0 [shape = 's32[1]{0}', space=sflag, size = 0x4, scoped, tag = 'scoped memory for tile.13']
  %s0 = inlined_call_operand.vmem [shape: f32[32], index: 0, kind: input, shape index: {}]
  %s1 = inlined_call_operand.vmem [shape: f32[8,32], index: 1, kind: output, shape index: {}]
  // Predicated region
  $region2: #{tile.13} parent=0 // pred_check
    _
  $region3: #{tile.13} parent=0 // pred_check_branch
    %3 = sbr.rel (0) target = $region5
  $region4: #{tile.13} parent=0 // pred_region
    _
  $region5: #{tile.13} parent=0 // pred_fallthru
    _
  %v4 = vld [vmem:[%s0] ss:$0 sm:$0xff]
  %5 = vst [vmem:[%s1] sm:$0xff] %v4

// kernel: tile.14
$region0: #{tile.14}
  %s0 = inlined_call_operand.vmem [shape: f32[8,32], index: 0, kind: input, shape index: {}]
  %s1 = inlined_call_operand.vmem [shape: f32[1,256], index: 1, kind: output, shape index: {}]
  $region1: #{tile.14} parent=0
    #allocation0 [shape = 'u8[8192]{0}', space=vmem, size = 0x2000, scoped, tag = 'scoped mem for output reshape']
    %s2 = smov 3
    %v3 = vld [vmem:[%s0] ss:$4 sm:%s2]
    %vm4 = vcmask 261120
    %5 = vst.msk [vmem:[#allocation0] ss:$8 sm:$0x3] %vm4, %v3
    %s6 = scalar_lea.vmem %s0, 3
    %s7 = smov 3
    %v8 = vld [vmem:[%s6] ss:$4 sm:%s7]
    %9 = vrot.lane.b32.xlu0 %v8, 96
    %v10 = vpop.permute.xlu0 %9
    %vm11 = vcmask 1048320
    %12 = vst.msk [vmem:[#allocation0] ss:$8 sm:$0x3] %vm11, %v10
    %s13 = scalar_lea.vmem %s0, 2
    %s14 = smov 3
    %v15 = vld [vmem:[%s13] ss:$4 sm:%s14]
    %16 = vrot.lane.b32.xlu0 %v15, 64
    %v17 = vpop.permute.xlu0 %16
    %vm18 = vcmask 785920
    %19 = vst.msk [vmem:[#allocation0] ss:$8 sm:$0x3] %vm18, %v17
    %s20 = scalar_lea.vmem %s0, 1
    %s21 = smov 3
    %v22 = vld [vmem:[%s20] ss:$4 sm:%s21]
    %23 = vrot.lane.b32.xlu0 %v22, 32
    %v24 = vpop.permute.xlu0 %23
    %vm25 = vcmask 523520
    %26 = vst.msk [vmem:[#allocation0] ss:$8 sm:$0x3] %vm25, %v24
    %s28 = sshllo.u32 0, 1
    %v30 = vld [vmem:[#allocation0] sm:%s28]
    %s31 = sshllo.u32 0, 1
    %32 = vst [vmem:[%s1] sm:%s31] %v30
    %s33 = scalar_lea.vmem [#allocation0], 8
    %v34 = vld [vmem:[%s33] sm:%s28]
    %s35 = sshllo.u32 0, 1
    %s36 = scalar_lea.vmem %s1, 1
    %37 = vst [vmem:[%s36] sm:%s35] %v34

// kernel: time_encode.1
$region0: #{time_encode.1}
  #allocation0 [shape = 'u32[]', space=smem, size = 0x4, offset = 0x4, fixed_abs, tag = 'smem constant byte address 0x4 - core index']
  #allocation1 [shape = 'u32[144,128]{1,0:T(1,128)}', space=vmem, size = 0x12000, scoped, tag = 'internal scratch']
  %s0 = inlined_call_operand.vmem [shape: f32[8,8], index: 0, kind: input, shape index: {}]
  %s1 = inlined_call_operand.vmem [shape: f32[8,256], index: 1, kind: input, shape index: {}]
  %s2 = inlined_call_operand.vmem [shape: f32[1,256], index: 2, kind: input, shape index: {}]
  %s3 = inlined_call_operand.vmem [shape: f32[1,256], index: 3, kind: input, shape index: {}]
  %s4 = inlined_call_operand.vmem [shape: f32[8,256], index: 4, kind: output, shape index: {}]
  %s5 = sld [smem:[#allocation0]]
  $region26: #{time_encode.1} parent=0
    _
  %s7 = ssub.s32 1, %s5
  %s8 = scalar_select 0, %s7, %s5
  // Predicated region
  $region2: #{time_encode.1} parent=0 // pred_check
    _
  $region3: #{time_encode.1} parent=0 // pred_check_branch
    %10 = sbr.rel (0) target = $region5
  $region4: #{time_encode.1} parent=0 // pred_region
    _
  $region5: #{time_encode.1} parent=0 // pred_fallthru
    _
  // Predicated region
  $region6: #{time_encode.1} parent=0 // pred_check
    _
  $region7: #{time_encode.1} parent=0 // pred_check_branch
    %12 = sbr.rel (0) target = $region9
  $region8: #{time_encode.1} parent=0 // pred_region
    _
  $region9: #{time_encode.1} parent=0 // pred_fallthru
    _
  // Predicated region
  $region10: #{time_encode.1} parent=0 // pred_check
    _
  $region11: #{time_encode.1} parent=0 // pred_check_branch
    %14 = sbr.rel (0) target = $region13
  $region12: #{time_encode.1} parent=0 // pred_region
    _
  $region13: #{time_encode.1} parent=0 // pred_fallthru
    _
  // Predicated region
  $region14: #{time_encode.1} parent=0 // pred_check
    _
  $region15: #{time_encode.1} parent=0 // pred_check_branch
    %16 = sbr.rel (0) target = $region17
  $region16: #{time_encode.1} parent=0 // pred_region
    _
  $region17: #{time_encode.1} parent=0 // pred_fallthru
    _
  %v17 = vld [vmem:[%s0] sm:$0xff]
  %19 = vset.pattern.permute.xlu0 0
  %20 = vperm.xlu0 %19, %v17
  %v21 = vpop.permute.xlu0 %20
  %v23 = vsub.f32 %v21, %v17
  %v24 = vld [vmem:[%s1] sm:$0xff]
  %v25 = vld [vmem:[%s1 + $0x8] sm:$0xff]
  %vm26 = vcmask 64512
  %v28 = vsel %vm26, %v23, 0
  %v30 = vand.u32 %v25, 4294901760
  %31 = vmatprep.subr.mxu0 %v30
  %v32 = vand.u32 %v24, 4294901760
  %33 = vmatpush1.msra.mxu0 %v32
  %34 = vmatprep.subr.mxu0 0.0
  %35 = vmatpush1.msra.mxu0 0.0
  %36 = vmatprep.subr.mxu0 0.0
  %37 = vmatpush1.msra.mxu0 0.0
  %38 = vmatprep.subr.mxu0 0.0
  %39 = vmatpush1.msra.mxu0 0.0
  %40 = vmatprep.subr.mxu0 0.0
  %41 = vmatpush1.msra.mxu0 0.0
  %42 = vmatprep.subr.mxu0 0.0
  %43 = vmatpush1.msra.mxu0 0.0
  %44 = vmatprep.subr.mxu0 0.0
  %45 = vmatpush1.msra.mxu0 0.0
  %46 = vmatprep.subr.mxu0 0.0
  %47 = vmatpush1.msra.mxu0 0.0
  %48 = vmatprep.subr.mxu0 0.0
  %49 = vmatpush1.msra.mxu0 0.0
  %50 = vmatprep.subr.mxu0 0.0
  %51 = vmatpush1.msra.mxu0 0.0
  %52 = vmatprep.subr.mxu0 0.0
  %53 = vmatpush1.msra.mxu0 0.0
  %54 = vmatprep.subr.mxu0 0.0
  %55 = vmatpush1.msra.mxu0 0.0
  %56 = vmatprep.subr.mxu0 0.0
  %57 = vmatpush1.msra.mxu0 0.0
  %58 = vmatprep.subr.mxu0 0.0
  %59 = vmatpush1.msra.mxu0 0.0
  %60 = vmatprep.subr.mxu0 0.0
  %61 = vmatpush1.msra.mxu0 0.0
  %62 = vmatprep.subr.mxu0 0.0
  %63 = vmatpush1.msra.mxu0 0.0
  %64 = vmatprep.subr.mxu0 0.0
  %65 = vmatpush1.msra.mxu0 0.0
  %66 = vmatprep.subr.mxu0 0.0
  %67 = vmatpush1.msra.mxu0 0.0
  %68 = vmatprep.subr.mxu0 0.0
  %69 = vmatpush1.msra.mxu0 0.0
  %70 = vmatprep.subr.mxu0 0.0
  %71 = vmatpush1.msra.mxu0 0.0
  %72 = vmatprep.subr.mxu0 0.0
  %73 = vmatpush1.msra.mxu0 0.0
  %74 = vmatprep.subr.mxu0 0.0
  %75 = vmatpush1.msra.mxu0 0.0
  %76 = vmatprep.subr.mxu0 0.0
  %77 = vmatpush1.msra.mxu0 0.0
  %78 = vmatprep.subr.mxu0 0.0
  %79 = vmatpush1.msra.mxu0 0.0
  %80 = vmatprep.subr.mxu0 0.0
  %81 = vmatpush1.msra.mxu0 0.0
  %82 = vmatprep.subr.mxu0 0.0
  %83 = vmatpush1.msra.mxu0 0.0
  %84 = vmatprep.subr.mxu0 0.0
  %85 = vmatpush1.msra.mxu0 0.0
  %86 = vmatprep.subr.mxu0 0.0
  %87 = vmatpush1.msra.mxu0 0.0
  %88 = vmatprep.subr.mxu0 0.0
  %89 = vmatpush1.msra.mxu0 0.0
  %90 = vmatprep.subr.mxu0 0.0
  %91 = vmatpush1.msra.mxu0 0.0
  %92 = vmatprep.subr.mxu0 0.0
  %93 = vmatpush1.msra.mxu0 0.0
  %94 = vmatprep.subr.mxu0 0.0
  %95 = vmatpush1.msra.mxu0 0.0
  %96 = vmatprep.mubr.f32.mxu0 0.0
  %v97 = vand.u32 %v28, 4294901760
  %v98 = vsub.f32 %v28, %v97
  %v99 = vand.u32 %v98, 4294901760
  %v100 = vsub.f32 %v98, %v99
  %v101 = vand.u32 %v100, 4294901760
  %102 = vmatmul.mubr.f32.gmra.mrb[0].mxu0 %v101
  %v103 = vpop.f32.mrb[0].mxu0
  %v104 = vadd.f32 0.0, %v103
  %v105 = vpop.f32.mrb[0].mxu0
  %v106 = vadd.f32 0.0, %v105
  %107 = vdwg.mxu0
  %v108 = vand.u32 %v25, 4294901760
  %v109 = vsub.f32 %v25, %v108
  %v110 = vand.u32 %v109, 4294901760
  %v111 = vsub.f32 %v109, %v110
  %v112 = vand.u32 %v111, 4294901760
  %113 = vmatprep.subr.mxu0 %v112
  %v114 = vand.u32 %v24, 4294901760
  %v115 = vsub.f32 %v24, %v114
  %v116 = vand.u32 %v115, 4294901760
  %v117 = vsub.f32 %v115, %v116
  %v118 = vand.u32 %v117, 4294901760
  %119 = vmatpush1.msra.mxu0 %v118
  %120 = vmatprep.subr.mxu0 0.0
  %121 = vmatpush1.msra.mxu0 0.0
  %122 = vmatprep.subr.mxu0 0.0
  %123 = vmatpush1.msra.mxu0 0.0
  %124 = vmatprep.subr.mxu0 0.0
  %125 = vmatpush1.msra.mxu0 0.0
  %126 = vmatprep.subr.mxu0 0.0
  %127 = vmatpush1.msra.mxu0 0.0
  %128 = vmatprep.subr.mxu0 0.0
  %129 = vmatpush1.msra.mxu0 0.0
  %130 = vmatprep.subr.mxu0 0.0
  %131 = vmatpush1.msra.mxu0 0.0
  %132 = vmatprep.subr.mxu0 0.0
  %133 = vmatpush1.msra.mxu0 0.0
  %134 = vmatprep.subr.mxu0 0.0
  %135 = vmatpush1.msra.mxu0 0.0
  %136 = vmatprep.subr.mxu0 0.0
  %137 = vmatpush1.msra.mxu0 0.0
  %138 = vmatprep.subr.mxu0 0.0
  %139 = vmatpush1.msra.mxu0 0.0
  %140 = vmatprep.subr.mxu0 0.0
  %141 = vmatpush1.msra.mxu0 0.0
  %142 = vmatprep.subr.mxu0 0.0
  %143 = vmatpush1.msra.mxu0 0.0
  %144 = vmatprep.subr.mxu0 0.0
  %145 = vmatpush1.msra.mxu0 0.0
  %146 = vmatprep.subr.mxu0 0.0
  %147 = vmatpush1.msra.mxu0 0.0
  %148 = vmatprep.subr.mxu0 0.0
  %149 = vmatpush1.msra.mxu0 0.0
  %150 = vmatprep.subr.mxu0 0.0
  %151 = vmatpush1.msra.mxu0 0.0
  %152 = vmatprep.subr.mxu0 0.0
  %153 = vmatpush1.msra.mxu0 0.0
  %154 = vmatprep.subr.mxu0 0.0
  %155 = vmatpush1.msra.mxu0 0.0
  %156 = vmatprep.subr.mxu0 0.0
  %157 = vmatpush1.msra.mxu0 0.0
  %158 = vmatprep.subr.mxu0 0.0
  %159 = vmatpush1.msra.mxu0 0.0
  %160 = vmatprep.subr.mxu0 0.0
  %161 = vmatpush1.msra.mxu0 0.0
  %162 = vmatprep.subr.mxu0 0.0
  %163 = vmatpush1.msra.mxu0 0.0
  %164 = vmatprep.subr.mxu0 0.0
  %165 = vmatpush1.msra.mxu0 0.0
  %166 = vmatprep.subr.mxu0 0.0
  %167 = vmatpush1.msra.mxu0 0.0
  %168 = vmatprep.subr.mxu0 0.0
  %169 = vmatpush1.msra.mxu0 0.0
  %170 = vmatprep.subr.mxu0 0.0
  %171 = vmatpush1.msra.mxu0 0.0
  %172 = vmatprep.subr.mxu0 0.0
  %173 = vmatpush1.msra.mxu0 0.0
  %174 = vmatprep.subr.mxu0 0.0
  %175 = vmatpush1.msra.mxu0 0.0
  %176 = vmatprep.subr.mxu0 0.0
  %177 = vmatpush1.msra.mxu0 0.0
  %178 = vmatprep.subr.mxu0 0.0
  %179 = vmatpush1.msra.mxu0 0.0
  %180 = vmatprep.subr.mxu0 0.0
  %181 = vmatpush1.msra.mxu0 0.0
  %182 = vmatprep.mubr.f32.mxu0 0.0
  %v183 = vand.u32 %v28, 4294901760
  %184 = vmatmul.mubr.f32.gmra.mrb[0].mxu0 %v183
  %v185 = vpop.f32.mrb[0].mxu0
  %v186 = vadd.f32 %v104, %v185
  %v187 = vpop.f32.mrb[0].mxu0
  %v188 = vadd.f32 %v106, %v187
  %189 = vdwg.mxu0
  %v190 = vand.u32 %v25, 4294901760
  %v191 = vsub.f32 %v25, %v190
  %192 = vmatprep.subr.mxu0 %v191
  %v193 = vand.u32 %v24, 4294901760
  %v194 = vsub.f32 %v24, %v193
  %195 = vmatpush1.msra.mxu0 %v194
  %196 = vmatprep.subr.mxu0 0.0
  %197 = vmatpush1.msra.mxu0 0.0
  %198 = vmatprep.subr.mxu0 0.0
  %199 = vmatpush1.msra.mxu0 0.0
  %200 = vmatprep.subr.mxu0 0.0
  %201 = vmatpush1.msra.mxu0 0.0
  %202 = vmatprep.subr.mxu0 0.0
  %203 = vmatpush1.msra.mxu0 0.0
  %204 = vmatprep.subr.mxu0 0.0
  %205 = vmatpush1.msra.mxu0 0.0
  %206 = vmatprep.subr.mxu0 0.0
  %207 = vmatpush1.msra.mxu0 0.0
  %208 = vmatprep.subr.mxu0 0.0
  %209 = vmatpush1.msra.mxu0 0.0
  %210 = vmatprep.subr.mxu0 0.0
  %211 = vmatpush1.msra.mxu0 0.0
  %212 = vmatprep.subr.mxu0 0.0
  %213 = vmatpush1.msra.mxu0 0.0
  %214 = vmatprep.subr.mxu0 0.0
  %215 = vmatpush1.msra.mxu0 0.0
  %216 = vmatprep.subr.mxu0 0.0
  %217 = vmatpush1.msra.mxu0 0.0
  %218 = vmatprep.subr.mxu0 0.0
  %219 = vmatpush1.msra.mxu0 0.0
  %220 = vmatprep.subr.mxu0 0.0
  %221 = vmatpush1.msra.mxu0 0.0
  %222 = vmatprep.subr.mxu0 0.0
  %223 = vmatpush1.msra.mxu0 0.0
  %224 = vmatprep.subr.mxu0 0.0
  %225 = vmatpush1.msra.mxu0 0.0
  %226 = vmatprep.subr.mxu0 0.0
  %227 = vmatpush1.msra.mxu0 0.0
  %228 = vmatprep.subr.mxu0 0.0
  %229 = vmatpush1.msra.mxu0 0.0
  %230 = vmatprep.subr.mxu0 0.0
  %231 = vmatpush1.msra.mxu0 0.0
  %232 = vmatprep.subr.mxu0 0.0
  %233 = vmatpush1.msra.mxu0 0.0
  %234 = vmatprep.subr.mxu0 0.0
  %235 = vmatpush1.msra.mxu0 0.0
  %236 = vmatprep.subr.mxu0 0.0
  %237 = vmatpush1.msra.mxu0 0.0
  %238 = vmatprep.subr.mxu0 0.0
  %239 = vmatpush1.msra.mxu0 0.0
  %240 = vmatprep.subr.mxu0 0.0
  %241 = vmatpush1.msra.mxu0 0.0
  %242 = vmatprep.subr.mxu0 0.0
  %243 = vmatpush1.msra.mxu0 0.0
  %244 = vmatprep.subr.mxu0 0.0
  %245 = vmatpush1.msra.mxu0 0.0
  %246 = vmatprep.subr.mxu0 0.0
  %247 = vmatpush1.msra.mxu0 0.0
  %248 = vmatprep.subr.mxu0 0.0
  %249 = vmatpush1.msra.mxu0 0.0
  %250 = vmatprep.subr.mxu0 0.0
  %251 = vmatpush1.msra.mxu0 0.0
  %252 = vmatprep.subr.mxu0 0.0
  %253 = vmatpush1.msra.mxu0 0.0
  %254 = vmatprep.subr.mxu0 0.0
  %255 = vmatpush1.msra.mxu0 0.0
  %256 = vmatprep.subr.mxu0 0.0
  %257 = vmatpush1.msra.mxu0 0.0
  %258 = vmatprep.mubr.f32.mxu0 0.0
  %v259 = vand.u32 %v28, 4294901760
  %v260 = vsub.f32 %v28, %v259
  %261 = vmatmul.mubr.f32.gmra.mrb[0].mxu0 %v260
  %v262 = vpop.f32.mrb[0].mxu0
  %v263 = vadd.f32 %v186, %v262
  %v264 = vpop.f32.mrb[0].mxu0
  %v265 = vadd.f32 %v188, %v264
  %266 = vdwg.mxu0
  %v267 = vand.u32 %v25, 4294901760
  %268 = vmatprep.subr.mxu0 %v267
  %v269 = vand.u32 %v24, 4294901760
  %270 = vmatpush1.msra.mxu0 %v269
  %271 = vmatprep.subr.mxu0 0.0
  %272 = vmatpush1.msra.mxu0 0.0
  %273 = vmatprep.subr.mxu0 0.0
  %274 = vmatpush1.msra.mxu0 0.0
  %275 = vmatprep.subr.mxu0 0.0
  %276 = vmatpush1.msra.mxu0 0.0
  %277 = vmatprep.subr.mxu0 0.0
  %278 = vmatpush1.msra.mxu0 0.0
  %279 = vmatprep.subr.mxu0 0.0
  %280 = vmatpush1.msra.mxu0 0.0
  %281 = vmatprep.subr.mxu0 0.0
  %282 = vmatpush1.msra.mxu0 0.0
  %283 = vmatprep.subr.mxu0 0.0
  %284 = vmatpush1.msra.mxu0 0.0
  %285 = vmatprep.subr.mxu0 0.0
  %286 = vmatpush1.msra.mxu0 0.0
  %287 = vmatprep.subr.mxu0 0.0
  %288 = vmatpush1.msra.mxu0 0.0
  %289 = vmatprep.subr.mxu0 0.0
  %290 = vmatpush1.msra.mxu0 0.0
  %291 = vmatprep.subr.mxu0 0.0
  %292 = vmatpush1.msra.mxu0 0.0
  %293 = vmatprep.subr.mxu0 0.0
  %294 = vmatpush1.msra.mxu0 0.0
  %295 = vmatprep.subr.mxu0 0.0
  %296 = vmatpush1.msra.mxu0 0.0
  %297 = vmatprep.subr.mxu0 0.0
  %298 = vmatpush1.msra.mxu0 0.0
  %299 = vmatprep.subr.mxu0 0.0
  %300 = vmatpush1.msra.mxu0 0.0
  %301 = vmatprep.subr.mxu0 0.0
  %302 = vmatpush1.msra.mxu0 0.0
  %303 = vmatprep.subr.mxu0 0.0
  %304 = vmatpush1.msra.mxu0 0.0
  %305 = vmatprep.subr.mxu0 0.0
  %306 = vmatpush1.msra.mxu0 0.0
  %307 = vmatprep.subr.mxu0 0.0
  %308 = vmatpush1.msra.mxu0 0.0
  %309 = vmatprep.subr.mxu0 0.0
  %310 = vmatpush1.msra.mxu0 0.0
  %311 = vmatprep.subr.mxu0 0.0
  %312 = vmatpush1.msra.mxu0 0.0
  %313 = vmatprep.subr.mxu0 0.0
  %314 = vmatpush1.msra.mxu0 0.0
  %315 = vmatprep.subr.mxu0 0.0
  %316 = vmatpush1.msra.mxu0 0.0
  %317 = vmatprep.subr.mxu0 0.0
  %318 = vmatpush1.msra.mxu0 0.0
  %319 = vmatprep.subr.mxu0 0.0
  %320 = vmatpush1.msra.mxu0 0.0
  %321 = vmatprep.subr.mxu0 0.0
  %322 = vmatpush1.msra.mxu0 0.0
  %323 = vmatprep.subr.mxu0 0.0
  %324 = vmatpush1.msra.mxu0 0.0
  %325 = vmatprep.subr.mxu0 0.0
  %326 = vmatpush1.msra.mxu0 0.0
  %327 = vmatprep.subr.mxu0 0.0
  %328 = vmatpush1.msra.mxu0 0.0
  %329 = vmatprep.subr.mxu0 0.0
  %330 = vmatpush1.msra.mxu0 0.0
  %331 = vmatprep.subr.mxu0 0.0
  %332 = vmatpush1.msra.mxu0 0.0
  %333 = vmatprep.mubr.f32.mxu0 0.0
  %v334 = vand.u32 %v28, 4294901760
  %v335 = vsub.f32 %v28, %v334
  %v336 = vand.u32 %v335, 4294901760
  %337 = vmatmul.mubr.f32.gmra.mrb[0].mxu0 %v336
  %v338 = vpop.f32.mrb[0].mxu0
  %v339 = vadd.f32 %v263, %v338
  %v340 = vpop.f32.mrb[0].mxu0
  %v341 = vadd.f32 %v265, %v340
  %342 = vdwg.mxu0
  %v343 = vand.u32 %v25, 4294901760
  %v344 = vsub.f32 %v25, %v343
  %v345 = vand.u32 %v344, 4294901760
  %346 = vmatprep.subr.mxu0 %v345
  %v347 = vand.u32 %v24, 4294901760
  %v348 = vsub.f32 %v24, %v347
  %v349 = vand.u32 %v348, 4294901760
  %350 = vmatpush1.msra.mxu0 %v349
  %351 = vmatprep.subr.mxu0 0.0
  %352 = vmatpush1.msra.mxu0 0.0
  %353 = vmatprep.subr.mxu0 0.0
  %354 = vmatpush1.msra.mxu0 0.0
  %355 = vmatprep.subr.mxu0 0.0
  %356 = vmatpush1.msra.mxu0 0.0
  %357 = vmatprep.subr.mxu0 0.0
  %358 = vmatpush1.msra.mxu0 0.0
  %359 = vmatprep.subr.mxu0 0.0
  %360 = vmatpush1.msra.mxu0 0.0
  %361 = vmatprep.subr.mxu0 0.0
  %362 = vmatpush1.msra.mxu0 0.0
  %363 = vmatprep.subr.mxu0 0.0
  %364 = vmatpush1.msra.mxu0 0.0
  %365 = vmatprep.subr.mxu0 0.0
  %366 = vmatpush1.msra.mxu0 0.0
  %367 = vmatprep.subr.mxu0 0.0
  %368 = vmatpush1.msra.mxu0 0.0
  %369 = vmatprep.subr.mxu0 0.0
  %370 = vmatpush1.msra.mxu0 0.0
  %371 = vmatprep.subr.mxu0 0.0
  %372 = vmatpush1.msra.mxu0 0.0
  %373 = vmatprep.subr.mxu0 0.0
  %374 = vmatpush1.msra.mxu0 0.0
  %375 = vmatprep.subr.mxu0 0.0
  %376 = vmatpush1.msra.mxu0 0.0
  %377 = vmatprep.subr.mxu0 0.0
  %378 = vmatpush1.msra.mxu0 0.0
  %379 = vmatprep.subr.mxu0 0.0
  %380 = vmatpush1.msra.mxu0 0.0
  %381 = vmatprep.subr.mxu0 0.0
  %382 = vmatpush1.msra.mxu0 0.0
  %383 = vmatprep.subr.mxu0 0.0
  %384 = vmatpush1.msra.mxu0 0.0
  %385 = vmatprep.subr.mxu0 0.0
  %386 = vmatpush1.msra.mxu0 0.0
  %387 = vmatprep.subr.mxu0 0.0
  %388 = vmatpush1.msra.mxu0 0.0
  %389 = vmatprep.subr.mxu0 0.0
  %390 = vmatpush1.msra.mxu0 0.0
  %391 = vmatprep.subr.mxu0 0.0
  %392 = vmatpush1.msra.mxu0 0.0
  %393 = vmatprep.subr.mxu0 0.0
  %394 = vmatpush1.msra.mxu0 0.0
  %395 = vmatprep.subr.mxu0 0.0
  %396 = vmatpush1.msra.mxu0 0.0
  %397 = vmatprep.subr.mxu0 0.0
  %398 = vmatpush1.msra.mxu0 0.0
  %399 = vmatprep.subr.mxu0 0.0
  %400 = vmatpush1.msra.mxu0 0.0
  %401 = vmatprep.subr.mxu0 0.0
  %402 = vmatpush1.msra.mxu0 0.0
  %403 = vmatprep.subr.mxu0 0.0
  %404 = vmatpush1.msra.mxu0 0.0
  %405 = vmatprep.subr.mxu0 0.0
  %406 = vmatpush1.msra.mxu0 0.0
  %407 = vmatprep.subr.mxu0 0.0
  %408 = vmatpush1.msra.mxu0 0.0
  %409 = vmatprep.subr.mxu0 0.0
  %410 = vmatpush1.msra.mxu0 0.0
  %411 = vmatprep.subr.mxu0 0.0
  %412 = vmatpush1.msra.mxu0 0.0
  %413 = vmatprep.mubr.f32.mxu0 0.0
  %v414 = vand.u32 %v28, 4294901760
  %415 = vmatmul.mubr.f32.gmra.mrb[0].mxu0 %v414
  %v416 = vpop.f32.mrb[0].mxu0
  %v417 = vadd.f32 %v339, %v416
  %v418 = vpop.f32.mrb[0].mxu0
  %v419 = vadd.f32 %v341, %v418
  %420 = vdwg.mxu0
  %v421 = vand.u32 %v25, 4294901760
  %422 = vmatprep.subr.mxu0 %v421
  %v423 = vand.u32 %v24, 4294901760
  %424 = vmatpush1.msra.mxu0 %v423
  %425 = vmatprep.subr.mxu0 0.0
  %426 = vmatpush1.msra.mxu0 0.0
  %427 = vmatprep.subr.mxu0 0.0
  %428 = vmatpush1.msra.mxu0 0.0
  %429 = vmatprep.subr.mxu0 0.0
  %430 = vmatpush1.msra.mxu0 0.0
  %431 = vmatprep.subr.mxu0 0.0
  %432 = vmatpush1.msra.mxu0 0.0
  %433 = vmatprep.subr.mxu0 0.0
  %434 = vmatpush1.msra.mxu0 0.0
  %435 = vmatprep.subr.mxu0 0.0
  %436 = vmatpush1.msra.mxu0 0.0
  %437 = vmatprep.subr.mxu0 0.0
  %438 = vmatpush1.msra.mxu0 0.0
  %439 = vmatprep.subr.mxu0 0.0
  %440 = vmatpush1.msra.mxu0 0.0
  %441 = vmatprep.subr.mxu0 0.0
  %442 = vmatpush1.msra.mxu0 0.0
  %443 = vmatprep.subr.mxu0 0.0
  %444 = vmatpush1.msra.mxu0 0.0
  %445 = vmatprep.subr.mxu0 0.0
  %446 = vmatpush1.msra.mxu0 0.0
  %447 = vmatprep.subr.mxu0 0.0
  %448 = vmatpush1.msra.mxu0 0.0
  %449 = vmatprep.subr.mxu0 0.0
  %450 = vmatpush1.msra.mxu0 0.0
  %451 = vmatprep.subr.mxu0 0.0
  %452 = vmatpush1.msra.mxu0 0.0
  %453 = vmatprep.subr.mxu0 0.0
  %454 = vmatpush1.msra.mxu0 0.0
  %455 = vmatprep.subr.mxu0 0.0
  %456 = vmatpush1.msra.mxu0 0.0
  %457 = vmatprep.subr.mxu0 0.0
  %458 = vmatpush1.msra.mxu0 0.0
  %459 = vmatprep.subr.mxu0 0.0
  %460 = vmatpush1.msra.mxu0 0.0
  %461 = vmatprep.subr.mxu0 0.0
  %462 = vmatpush1.msra.mxu0 0.0
  %463 = vmatprep.subr.mxu0 0.0
  %464 = vmatpush1.msra.mxu0 0.0
  %465 = vmatprep.subr.mxu0 0.0
  %466 = vmatpush1.msra.mxu0 0.0
  %467 = vmatprep.subr.mxu0 0.0
  %468 = vmatpush1.msra.mxu0 0.0
  %469 = vmatprep.subr.mxu0 0.0
  %470 = vmatpush1.msra.mxu0 0.0
  %471 = vmatprep.subr.mxu0 0.0
  %472 = vmatpush1.msra.mxu0 0.0
  %473 = vmatprep.subr.mxu0 0.0
  %474 = vmatpush1.msra.mxu0 0.0
  %475 = vmatprep.subr.mxu0 0.0
  %476 = vmatpush1.msra.mxu0 0.0
  %477 = vmatprep.subr.mxu0 0.0
  %478 = vmatpush1.msra.mxu0 0.0
  %479 = vmatprep.subr.mxu0 0.0
  %480 = vmatpush1.msra.mxu0 0.0
  %481 = vmatprep.subr.mxu0 0.0
  %482 = vmatpush1.msra.mxu0 0.0
  %483 = vmatprep.subr.mxu0 0.0
  %484 = vmatpush1.msra.mxu0 0.0
  %485 = vmatprep.subr.mxu0 0.0
  %486 = vmatpush1.msra.mxu0 0.0
  %487 = vmatprep.mubr.f32.mxu0 0.0
  %v488 = vand.u32 %v28, 4294901760
  %489 = vmatmul.mubr.f32.gmra.mrb[0].mxu0 %v488
  %v490 = vpop.f32.mrb[0].mxu0
  %v491 = vadd.f32 %v417, %v490
  %v492 = vpop.f32.mrb[0].mxu0
  %v493 = vadd.f32 %v419, %v492
  %494 = vdwg.mxu0
  %v495 = vld [vmem:[%s2] sm:$0x3]
  %v497 = vlaneseq
  %v498 = vshrl.u32 %v497, 7
  %v499 = vsub.s32 0, %v498
  %v500 = vrot.slane %v495, %v499
  %v501 = vlaneseq
  %v502 = vshrl.u32 %v501, 7
  %v503 = vsub.s32 1, %v502
  %v504 = vrot.slane %v495, %v503
  %v507 = vmul.f32 %v491, %v500
  %v508 = vmul.f32 %v493, %v504
  %v509 = vld [vmem:[%s3] sm:$0x3]
  %v511 = vlaneseq
  %v512 = vshrl.u32 %v511, 7
  %v513 = vsub.s32 0, %v512
  %v514 = vrot.slane %v509, %v513
  %v515 = vlaneseq
  %v516 = vshrl.u32 %v515, 7
  %v517 = vsub.s32 1, %v516
  %v518 = vrot.slane %v509, %v517
  %v521 = vadd.f32 %v507, %v514
  %v522 = vadd.f32 %v508, %v518
  %v523 = vand.u32 2147483647, %v521
  %vm524 = vcmp.le.f32.partialorder %v523, 0.7853982
  %vm525 = vcmp.lt.s32.totalorder %v521, 0
  %v526 = vand.u32 %v521, 2139095040
  %v527 = vshrl.u32 %v526, 23
  %v528 = vsub.s32 %v527, 127
  %v529 = vand.u32 2147483647, %v521
  %v530 = vand.u32 %v529, 8388607
  %v531 = vor.u32 %v530, 8388608
  %v532 = vsub.s32 0, %v531
  %v533 = vadd.s32 %v528, 1
  %vm534 = vcmp.gt.s32.totalorder %v533, 0
  %v535 = vsel %vm534, %v533, 0
  %v536 = vshrl.u32 %v535, 5
  %v537 = vand.u32 %v535, 31
  %v538 = vsub.s32 32, %v537
  %v539 = vshrl.u32 683565275, %v538
  %v540 = vshll.u32 683565275, %v537
  %v541 = vshrl.u32 2475754826, %v538
  %v542 = vor.u32 %v540, %v541
  %v543 = vshll.u32 2475754826, %v537
  %v544 = vshrl.u32 2131351028, %v538
  %v545 = vor.u32 %v543, %v544
  %v546 = vshll.u32 2131351028, %v537
  %v547 = vshrl.u32 2102212464, %v538
  %v548 = vor.u32 %v546, %v547
  %v549 = vshll.u32 2102212464, %v537
  %v550 = vshrl.u32 920167782, %v538
  %v551 = vor.u32 %v549, %v550
  %v552 = vshll.u32 920167782, %v537
  %v553 = vshrl.u32 1326507024, %v538
  %v554 = vor.u32 %v552, %v553
  %vm555 = vcmp.lt.s32.totalorder %v536, 1
  %vm556 = vcmp.lt.s32.totalorder %v536, 2
  %vm557 = vcmp.lt.s32.totalorder %v536, 3
  %vm558 = vcmp.lt.s32.totalorder %v536, 4
  %v559 = vsel %vm555, %v539, %v542
  %v560 = vsel %vm558, %v548, 2102212464
  %v561 = vsel %vm557, %v545, %v560
  %v562 = vsel %vm556, %v559, %v561
  %v563 = vsel %vm555, %v542, %v545
  %v564 = vsel %vm558, %v551, 920167782
  %v565 = vsel %vm557, %v548, %v564
  %v566 = vsel %vm556, %v563, %v565
  %v567 = vsel %vm555, %v545, %v548
  %v568 = vsel %vm558, %v554, 1326507024
  %v569 = vsel %vm557, %v551, %v568
  %v570 = vsel %vm556, %v567, %v569
  %v571 = vshll.u32 %v531, 8
  %v572 = vmul.u32.u64.compose %v571, %v570
  %v573 = vextract.low.u32 %v572
  %v574 = vextract.high.u32 %v572
  %v575 = vmul.u32.u64.compose %v571, %v566
  %v576 = vextract.low.u32 %v575
  %v577 = vextract.high.u32 %v575
  %v578 = vmul.u32 %v571, %v562
  %v579 = vadd.s32 %v574, %v576
  %vm580 = vc.u32 %v574, %v576
  %v581 = vadd.s32 %v577, 1
  %v582 = vsel %vm580, %v581, %v577
  %v583 = vadd.s32 %v578, %v582
  %v584 = vadd.s32 %v583, 536870912
  %v585 = vshrl.u32 %v584, 30
  %v586 = vshll.u32 %v585, 30
  %v587 = vsub.s32 %v583, %v586
  %vm588 = vcmp.lt.s32.totalorder %v587, 0
  %v589 = vsub.s32 0, %v587
  %v590 = vsel %vm588, %v589, %v587
  %v591 = vclz %v590
  %v592 = vsub.s32 %v591, 2
  %vm593 = vcmp.gt.s32.totalorder 0, %v592
  %v594 = vsel %vm593, 0, %v592
  %v595 = vsub.s32 32, %v594
  %v596 = vshll.u32 %v587, %v594
  %v597 = vshrl.u32 %v579, %v595
  %v598 = vor.u32 %v596, %v597
  %v599 = vsub.s32 4294967266, %v594
  %v600 = vadd.s32 %v599, 127
  %v601 = vshll.u32 %v600, 23
  %v602 = vor.u32 4788187, %v601
  %v603 = vand.u32 2147483647, %v602
  %v605 = vcvt.s32.f32 %v598
  %v606 = vmul.f32 %v605, %v603
  %v607 = vxor.u32 %v606, 2147483648
  %v608 = vsel %vm525, %v607, %v606
  %v609 = vsub.s32 4, %v585
  %v610 = vsel %vm525, %v609, %v585
  %v611 = vsel %vm524, %v521, %v608
  %v612 = vsel %vm524, 0, %v610
  %v613 = vcosq.f32.pop %v611
  %v614 = vsinq.f32.pop %v611
  %vm615 = vweird.f32 %v521
  %v616 = vand.u32 %v612, 3
  %vm617 = vcmp.lt.s32.totalorder %v616, 2
  %vm618 = vcmp.eq.s32.totalorder %v616, 0
  %v619 = vxor.u32 %v614, 2147483648
  %v620 = vsel %vm618, %v613, %v619
  %vm621 = vcmp.eq.s32.totalorder %v616, 2
  %v622 = vxor.u32 %v613, 2147483648
  %v623 = vsel %vm621, %v622, %v614
  %v624 = vsel %vm617, %v620, %v623
  %v625 = vsel %vm615, nan, %v624
  %v626 = vand.u32 2147483647, %v522
  %vm627 = vcmp.le.f32.partialorder %v626, 0.7853982
  %vm628 = vcmp.lt.s32.totalorder %v522, 0
  %v629 = vand.u32 %v522, 2139095040
  %v630 = vshrl.u32 %v629, 23
  %v631 = vsub.s32 %v630, 127
  %v632 = vand.u32 2147483647, %v522
  %v633 = vand.u32 %v632, 8388607
  %v634 = vor.u32 %v633, 8388608
  %v635 = vsub.s32 0, %v634
  %v636 = vadd.s32 %v631, 1
  %vm637 = vcmp.gt.s32.totalorder %v636, 0
  %v638 = vsel %vm637, %v636, 0
  %v639 = vshrl.u32 %v638, 5
  %v640 = vand.u32 %v638, 31
  %v641 = vsub.s32 32, %v640
  %v642 = vshrl.u32 683565275, %v641
  %v643 = vshll.u32 683565275, %v640
  %v644 = vshrl.u32 2475754826, %v641
  %v645 = vor.u32 %v643, %v644
  %v646 = vshll.u32 2475754826, %v640
  %v647 = vshrl.u32 2131351028, %v641
  %v648 = vor.u32 %v646, %v647
  %v649 = vshll.u32 2131351028, %v640
  %v650 = vshrl.u32 2102212464, %v641
  %v651 = vor.u32 %v649, %v650
  %v652 = vshll.u32 2102212464, %v640
  %v653 = vshrl.u32 920167782, %v641
  %v654 = vor.u32 %v652, %v653
  %v655 = vshll.u32 920167782, %v640
  %v656 = vshrl.u32 1326507024, %v641
  %v657 = vor.u32 %v655, %v656
  %vm658 = vcmp.lt.s32.totalorder %v639, 1
  %vm659 = vcmp.lt.s32.totalorder %v639, 2
  %vm660 = vcmp.lt.s32.totalorder %v639, 3
  %vm661 = vcmp.lt.s32.totalorder %v639, 4
  %v662 = vsel %vm658, %v642, %v645
  %v663 = vsel %vm661, %v651, 2102212464
  %v664 = vsel %vm660, %v648, %v663
  %v665 = vsel %vm659, %v662, %v664
  %v666 = vsel %vm658, %v645, %v648
  %v667 = vsel %vm661, %v654, 920167782
  %v668 = vsel %vm660, %v651, %v667
  %v669 = vsel %vm659, %v666, %v668
  %v670 = vsel %vm658, %v648, %v651
  %v671 = vsel %vm661, %v657, 1326507024
  %v672 = vsel %vm660, %v654, %v671
  %v673 = vsel %vm659, %v670, %v672
  %v674 = vshll.u32 %v634, 8
  %v675 = vmul.u32.u64.compose %v674, %v673
  %v676 = vextract.low.u32 %v675
  %v677 = vextract.high.u32 %v675
  %v678 = vmul.u32.u64.compose %v674, %v669
  %v679 = vextract.low.u32 %v678
  %v680 = vextract.high.u32 %v678
  %v681 = vmul.u32 %v674, %v665
  %v682 = vadd.s32 %v677, %v679
  %vm683 = vc.u32 %v677, %v679
  %v684 = vadd.s32 %v680, 1
  %v685 = vsel %vm683, %v684, %v680
  %v686 = vadd.s32 %v681, %v685
  %v687 = vadd.s32 %v686, 536870912
  %v688 = vshrl.u32 %v687, 30
  %v689 = vshll.u32 %v688, 30
  %v690 = vsub.s32 %v686, %v689
  %vm691 = vcmp.lt.s32.totalorder %v690, 0
  %v692 = vsub.s32 0, %v690
  %v693 = vsel %vm691, %v692, %v690
  %v694 = vclz %v693
  %v695 = vsub.s32 %v694, 2
  %vm696 = vcmp.gt.s32.totalorder 0, %v695
  %v697 = vsel %vm696, 0, %v695
  %v698 = vsub.s32 32, %v697
  %v699 = vshll.u32 %v690, %v697
  %v700 = vshrl.u32 %v682, %v698
  %v701 = vor.u32 %v699, %v700
  %v702 = vsub.s32 4294967266, %v697
  %v703 = vadd.s32 %v702, 127
  %v704 = vshll.u32 %v703, 23
  %v705 = vor.u32 4788187, %v704
  %v706 = vand.u32 2147483647, %v705
  %v708 = vcvt.s32.f32 %v701
  %v709 = vmul.f32 %v708, %v706
  %v710 = vxor.u32 %v709, 2147483648
  %v711 = vsel %vm628, %v710, %v709
  %v712 = vsub.s32 4, %v688
  %v713 = vsel %vm628, %v712, %v688
  %v714 = vsel %vm627, %v522, %v711
  %v715 = vsel %vm627, 0, %v713
  %v716 = vcosq.f32.pop %v714
  %v717 = vsinq.f32.pop %v714
  %vm718 = vweird.f32 %v522
  %v719 = vand.u32 %v715, 3
  %vm720 = vcmp.lt.s32.totalorder %v719, 2
  %vm721 = vcmp.eq.s32.totalorder %v719, 0
  %v722 = vxor.u32 %v717, 2147483648
  %v723 = vsel %vm721, %v716, %v722
  %vm724 = vcmp.eq.s32.totalorder %v719, 2
  %v725 = vxor.u32 %v716, 2147483648
  %v726 = vsel %vm724, %v725, %v717
  %v727 = vsel %vm720, %v723, %v726
  %v728 = vsel %vm718, nan, %v727
  %729 = vst [vmem:[%s4] sm:$0xff] %v625
  %730 = vst [vmem:[%s4 + $0x8] sm:$0xff] %v728
  // Predicated region
  $region18: #{time_encode.1} parent=0 // pred_check
    _
  $region19: #{time_encode.1} parent=0 // pred_check_branch
    %732 = sbr.rel (0) target = $region21
  $region20: #{time_encode.1} parent=0 // pred_region
    _
  $region21: #{time_encode.1} parent=0 // pred_fallthru
    _
  // Predicated region
  $region22: #{time_encode.1} parent=0 // pred_check
    _
  $region23: #{time_encode.1} parent=0 // pred_check_branch
    %734 = sbr.rel (0) target = $region25
  $region24: #{time_encode.1} parent=0 // pred_region
    _
  $region25: #{time_encode.1} parent=0 // pred_fallthru
    _

</llo_original>
